<compile_context>
chip_gen: v7x
topology: tpu7x:2x2x1
jax: 0.10.0
libtpu: 0.0.40
codegen_flags: <defaults>
</compile_context>

<pallas_src>
import jax
import jax.numpy as jnp
from jax import lax
from jax.experimental import pallas as pl
from jax.experimental.pallas import tpu as pltpu


def net_fused_kernel(p_ref, wc_ref, bc_ref, w1_ref, b1_ref, w2_ref, b2_ref, o_ref, hsq_ref):
    """Whole Net forward in one kernel invocation (everything VMEM-resident).

    p_ref  : (B, K, S)   im2col patches, p[b, k, s]                    (B=2, K=49, S=64)
    wc_ref : (C, K)      conv1 weight flattened (c_in == 1)            (C=4)
    bc_ref : (C, 1)      conv1 bias as a column (broadcast over lanes)
    w1_ref : (C, S, H)   fc1 weight, w1[c, s, o] == fc1_w[o, c*S + s]  (H=64)
    b1_ref : (1, H)
    w2_ref : (H, O)      fc2 weight transposed                         (O=2)
    b2_ref : (1, O)
    o_ref  : (B, O)
    hsq_ref: (C, B, S)   VMEM scratch: squared conv activations
    """
    B = p_ref.shape[0]

    # conv1 + bias + HE square: one (C,K)@(K,S) MXU push per batch element (B=2, static
    # unroll).  Results land in the (C, B, S) scratch in exactly the layout fc1 consumes,
    # so no in-kernel transpose / relayout of activations is needed.
    for b in range(B):
        hb = jnp.dot(wc_ref[...], p_ref[b],
                     preferred_element_type=jnp.float32) + bc_ref[...]      # (C, S)
        hsq_ref[:, b, :] = hb * hb

    # fc1 as a single batched contraction over the channel dim (torch's NCHW .view(B,-1)
    # flatten is realized on the weight side, w1[c] = fc1_w[:, c*S:(c+1)*S].T):
    # 4 independent (B,S)@(S,H) pushes that pipeline through the MXU, then a 3-add
    # channel reduction on the VPU — no M=1 pushes, no serial accumulate-through-dot chain.
    h3 = jnp.einsum('cbs,csh->cbh', hsq_ref[...], w1_ref[...],
                    preferred_element_type=jnp.float32)                     # (C, B, H)
    a1 = jnp.sum(h3, axis=0) + b1_ref[...]                                  # (B, H)
    a1 = a1 * a1                                                            # HE square

    # fc2 on the whole (B, H) block + one full-block store.
    o_ref[...] = jnp.dot(a1, w2_ref[...],
                         preferred_element_type=jnp.float32) + b2_ref[...]  # (B, O)


def net_forward(x, y, params):
    # TODO(synk): `y` is the HE evaluation metadata (windows_nb / eval context) of
    # hm.HConv2d; it has no plaintext numerical effect, so it is accepted and ignored.
    del y
    B = x.shape[0]
    kH = kW = 7
    stride = 3

    # Single XLA im2col op; the trailing reshape only collapses (OH, OW) -> S, so it is a
    # free (bitcast) reshape — no separate transpose fusion / HBM relayout.
    patches = lax.conv_general_dilated_patches(
        x, filter_shape=(kH, kW), window_strides=(stride, stride), padding="VALID",
        dimension_numbers=("NCHW", "OIHW", "NCHW"))          # (B, K, OH, OW)
    _, K, OH, OW = patches.shape
    S = OH * OW                                              # 64
    p = patches.reshape(B, K, S)

    C = params["conv_w"].shape[0]                            # 4
    # NOTE: reshape(C, K) matches conv_general_dilated_patches' (c_in, kh, kw) feature
    # ordering only because c_in == 1 here.
    wc = params["conv_w"].reshape(C, K)                      # (4, 49)
    bc = params["conv_b"].reshape(C, 1)                      # (4, 1)

    H = params["fc1_w"].shape[0]                             # 64
    # fc1_w is (H, C*S) with input features in torch NCHW order (c*S + s); reshape the
    # weight once at trace time so the kernel consumes activations in their natural layout.
    w1 = params["fc1_w"].T.reshape(C, S, H)                  # [c, s, o]
    b1 = params["fc1_b"].reshape(1, H)

    n_out = params["fc2_w"].shape[0]                         # 2
    w2 = params["fc2_w"].T                                   # (64, 2)
    b2 = params["fc2_b"].reshape(1, n_out)

    out = pl.pallas_call(
        net_fused_kernel,
        out_shape=jax.ShapeDtypeStruct((B, n_out), jnp.float32),
        grid=(1,),
        in_specs=[
            pl.BlockSpec((B, K, S), lambda i: (0, 0, 0)),
            pl.BlockSpec((C, K), lambda i: (0, 0)),
            pl.BlockSpec((C, 1), lambda i: (0, 0)),
            pl.BlockSpec((C, S, H), lambda i: (0, 0, 0)),
            pl.BlockSpec((1, H), lambda i: (0, 0)),
            pl.BlockSpec((H, n_out), lambda i: (0, 0)),
            pl.BlockSpec((1, n_out), lambda i: (0, 0)),
        ],
        out_specs=pl.BlockSpec((B, n_out), lambda i: (0, 0)),
        scratch_shapes=[pltpu.VMEM((C, B, S), jnp.float32)],
        compiler_params=pltpu.CompilerParams(dimension_semantics=("arbitrary",)),
    )(p, wc, bc, w1, b1, w2, b2)
    return out


def net_reference(x, params):
    """Independent plain-JAX reference (real conv + torch NCHW flatten)."""
    B = x.shape[0]
    conv = lax.conv_general_dilated(
        x, params["conv_w"], window_strides=(3, 3), padding="VALID",
        dimension_numbers=("NCHW", "OIHW", "NCHW"))
    conv = conv + params["conv_b"].reshape(1, -1, 1, 1)
    conv = conv * conv
    flat = conv.reshape(B, -1)                               # NCHW flatten: c*64 + s
    h = flat @ params["fc1_w"].T + params["fc1_b"]
    h = h * h
    return h @ params["fc2_w"].T + params["fc2_b"]


if __name__ == "__main__":
    key = jax.random.PRNGKey(0)
    kx, ky, kcw, kcb, k1w, k1b, k2w, k2b = jax.random.split(key, 8)

    B = 2
    x = jax.random.normal(kx, (B, 1, 30, 30), dtype=jnp.float32)
    y = jax.random.normal(ky, (B,), dtype=jnp.float32)  # placeholder HE metadata arg

    # Deterministic synthetic parameters (shapes from Net.__init__):
    # conv1: Conv2d(1, 4, 7, stride=3); fc1: Linear(256, 64); fc2: Linear(64, 2)
    params = {
        "conv_w": 0.10 * jax.random.normal(kcw, (4, 1, 7, 7), dtype=jnp.float32),
        "conv_b": 0.10 * jax.random.normal(kcb, (4,), dtype=jnp.float32),
        "fc1_w": 0.05 * jax.random.normal(k1w, (64, 256), dtype=jnp.float32),
        "fc1_b": 0.05 * jax.random.normal(k1b, (64,), dtype=jnp.float32),
        "fc2_w": 0.05 * jax.random.normal(k2w, (2, 64), dtype=jnp.float32),
        "fc2_b": 0.05 * jax.random.normal(k2b, (2,), dtype=jnp.float32),
    }

    out = jax.jit(net_forward)(x, y, params)
    out = jax.block_until_ready(out)
    assert out.shape == (B, 2) and out.dtype == jnp.float32

    ref = net_reference(x, params)
    assert jnp.allclose(out, ref, rtol=5e-2, atol=5e-2), (out, ref)
    print("KERNEL_OK")
</pallas_src>

<mosaic_0001>
module attributes {stable_mosaic.version = 11 : i64} {
  func.func @net_fused_kernel(%arg0: i32, %arg1: memref<2x49x64xf32, #tpu.memory_space<vmem>>, %arg2: memref<4x49xf32, #tpu.memory_space<vmem>>, %arg3: memref<4x1xf32, #tpu.memory_space<vmem>>, %arg4: memref<4x64x64xf32, #tpu.memory_space<vmem>>, %arg5: memref<1x64xf32, #tpu.memory_space<vmem>>, %arg6: memref<64x2xf32, #tpu.memory_space<vmem>>, %arg7: memref<1x2xf32, #tpu.memory_space<vmem>>, %arg8: memref<2x2xf32, #tpu.memory_space<vmem>>, %arg9: memref<4x2x64xf32, #tpu.memory_space<vmem>>) attributes {dimension_semantics = [#tpu.dimension_semantics<arbitrary>], iteration_bounds = array<i64: 1>, scalar_prefetch = 0 : i64, scratch_operands = 1 : i64, tpu.core_type = #tpu.core_type<tc>, window_params = [{pipeline_mode = #tpu.pipeline_mode<synchronous>, transform_indices = @transform_0, window_bounds = array<i64: 2, 49, 64>}, {pipeline_mode = #tpu.pipeline_mode<synchronous>, transform_indices = @transform_1, window_bounds = array<i64: 4, 49>}, {pipeline_mode = #tpu.pipeline_mode<synchronous>, transform_indices = @transform_2, window_bounds = array<i64: 4, 1>}, {pipeline_mode = #tpu.pipeline_mode<synchronous>, transform_indices = @transform_3, window_bounds = array<i64: 4, 64, 64>}, {pipeline_mode = #tpu.pipeline_mode<synchronous>, transform_indices = @transform_4, window_bounds = array<i64: 1, 64>}, {pipeline_mode = #tpu.pipeline_mode<synchronous>, transform_indices = @transform_5, window_bounds = array<i64: 64, 2>}, {pipeline_mode = #tpu.pipeline_mode<synchronous>, transform_indices = @transform_6, window_bounds = array<i64: 1, 2>}, {pipeline_mode = #tpu.pipeline_mode<synchronous>, transform_indices = @transform_7, window_bounds = array<i64: 2, 2>}]} {
    %c0 = arith.constant 0 : index
    %c0_0 = arith.constant 0 : index
    %0 = vector.load %arg2[%c0, %c0_0] : memref<4x49xf32, #tpu.memory_space<vmem>>, vector<4x49xf32>
    %c0_1 = arith.constant 0 : index
    %c0_2 = arith.constant 0 : index
    %c0_3 = arith.constant 0 : index
    %1 = vector.load %arg1[%c0_1, %c0_2, %c0_3] : memref<2x49x64xf32, #tpu.memory_space<vmem>>, vector<1x49x64xf32>
    %2 = vector.shape_cast %1 : vector<1x49x64xf32> to vector<49x64xf32>
    %cst = arith.constant dense<0.000000e+00> : vector<4x64xf32>
    %3 = tpu.matmul %0, %2, %cst {dimension_numbers = #tpu.dot_dimension_numbers<[1], [0], [0], [1], [0, 0, 1, 1], [], []>} : vector<4x49xf32>, vector<49x64xf32>, vector<4x64xf32> -> vector<4x64xf32>
    %c0_4 = arith.constant 0 : index
    %c0_5 = arith.constant 0 : index
    %4 = vector.load %arg3[%c0_4, %c0_5] : memref<4x1xf32, #tpu.memory_space<vmem>>, vector<4x1xf32>
    %5 = vector.broadcast %4 : vector<4x1xf32> to vector<4x64xf32>
    %6 = arith.addf %3, %5 : vector<4x64xf32>
    %7 = arith.mulf %6, %6 : vector<4x64xf32>
    %c0_6 = arith.constant 0 : index
    %c0_7 = arith.constant 0 : index
    %c0_8 = arith.constant 0 : index
    %8 = vector.load %arg9[%c0_6, %c0_7, %c0_8] : memref<4x2x64xf32, #tpu.memory_space<vmem>>, vector<4x1x64xf32>
    %9 = vector.shape_cast %8 : vector<4x1x64xf32> to vector<4x64xf32>
    %10 = vector.shape_cast %7 : vector<4x64xf32> to vector<4x1x64xf32>
    tpu.vector_store %arg9[%c0_6, %c0_7, %c0_8], %10 {strides = array<i32>} : memref<4x2x64xf32, #tpu.memory_space<vmem>>, vector<4x1x64xf32>,
    %c0_9 = arith.constant 0 : index
    %c0_10 = arith.constant 0 : index
    %11 = vector.load %arg2[%c0_9, %c0_10] : memref<4x49xf32, #tpu.memory_space<vmem>>, vector<4x49xf32>
    %c1 = arith.constant 1 : index
    %c0_11 = arith.constant 0 : index
    %c0_12 = arith.constant 0 : index
    %12 = vector.load %arg1[%c1, %c0_11, %c0_12] : memref<2x49x64xf32, #tpu.memory_space<vmem>>, vector<1x49x64xf32>
    %13 = vector.shape_cast %12 : vector<1x49x64xf32> to vector<49x64xf32>
    %cst_13 = arith.constant dense<0.000000e+00> : vector<4x64xf32>
    %14 = tpu.matmul %11, %13, %cst_13 {dimension_numbers = #tpu.dot_dimension_numbers<[1], [0], [0], [1], [0, 0, 1, 1], [], []>} : vector<4x49xf32>, vector<49x64xf32>, vector<4x64xf32> -> vector<4x64xf32>
    %c0_14 = arith.constant 0 : index
    %c0_15 = arith.constant 0 : index
    %15 = vector.load %arg3[%c0_14, %c0_15] : memref<4x1xf32, #tpu.memory_space<vmem>>, vector<4x1xf32>
    %16 = vector.broadcast %15 : vector<4x1xf32> to vector<4x64xf32>
    %17 = arith.addf %14, %16 : vector<4x64xf32>
    %18 = arith.mulf %17, %17 : vector<4x64xf32>
    %c0_16 = arith.constant 0 : index
    %c1_17 = arith.constant 1 : index
    %c0_18 = arith.constant 0 : index
    %19 = vector.load %arg9[%c0_16, %c1_17, %c0_18] : memref<4x2x64xf32, #tpu.memory_space<vmem>>, vector<4x1x64xf32>
    %20 = vector.shape_cast %19 : vector<4x1x64xf32> to vector<4x64xf32>
    %21 = vector.shape_cast %18 : vector<4x64xf32> to vector<4x1x64xf32>
    tpu.vector_store %arg9[%c0_16, %c1_17, %c0_18], %21 {strides = array<i32>} : memref<4x2x64xf32, #tpu.memory_space<vmem>>, vector<4x1x64xf32>,
    %c0_19 = arith.constant 0 : index
    %c0_20 = arith.constant 0 : index
    %c0_21 = arith.constant 0 : index
    %22 = vector.load %arg9[%c0_19, %c0_20, %c0_21] : memref<4x2x64xf32, #tpu.memory_space<vmem>>, vector<4x2x64xf32>
    %c0_22 = arith.constant 0 : index
    %c0_23 = arith.constant 0 : index
    %c0_24 = arith.constant 0 : index
    %23 = vector.load %arg4[%c0_22, %c0_23, %c0_24] : memref<4x64x64xf32, #tpu.memory_space<vmem>>, vector<4x64x64xf32>
    "tpu.trace_start"() <{level = 10 : i32, message = "cbs,csh->cbh"}> : () -> ()
    %cst_25 = arith.constant dense<0.000000e+00> : vector<4x2x64xf32>
    %24 = tpu.matmul %22, %23, %cst_25 {dimension_numbers = #tpu.dot_dimension_numbers<[2], [1], [1], [2], [0, 0, 0, 1, 1, 2], [0], [0]>} : vector<4x2x64xf32>, vector<4x64x64xf32>, vector<4x2x64xf32> -> vector<4x2x64xf32>
    "tpu.trace_stop"() : () -> ()
    %cst_26 = arith.constant dense<0.000000e+00> : vector<2x64xf32>
    %25 = vector.multi_reduction <add>, %24, %cst_26 [0] : vector<4x2x64xf32> to vector<2x64xf32>
    %c0_27 = arith.constant 0 : index
    %c0_28 = arith.constant 0 : index
    %26 = vector.load %arg5[%c0_27, %c0_28] : memref<1x64xf32, #tpu.memory_space<vmem>>, vector<1x64xf32>
    %27 = vector.broadcast %26 : vector<1x64xf32> to vector<2x64xf32>
    %28 = arith.addf %25, %27 : vector<2x64xf32>
    %29 = arith.mulf %28, %28 : vector<2x64xf32>
    %c0_29 = arith.constant 0 : index
    %c0_30 = arith.constant 0 : index
    %30 = vector.load %arg6[%c0_29, %c0_30] : memref<64x2xf32, #tpu.memory_space<vmem>>, vector<64x2xf32>
    %cst_31 = arith.constant dense<0.000000e+00> : vector<2x2xf32>
    %31 = tpu.matmul %29, %30, %cst_31 {dimension_numbers = #tpu.dot_dimension_numbers<[1], [0], [0], [1], [0, 0, 1, 1], [], []>} : vector<2x64xf32>, vector<64x2xf32>, vector<2x2xf32> -> vector<2x2xf32>
    %c0_32 = arith.constant 0 : index
    %c0_33 = arith.constant 0 : index
    %32 = vector.load %arg7[%c0_32, %c0_33] : memref<1x2xf32, #tpu.memory_space<vmem>>, vector<1x2xf32>
    %33 = vector.broadcast %32 : vector<1x2xf32> to vector<2x2xf32>
    %34 = arith.addf %31, %33 : vector<2x2xf32>
    %c0_34 = arith.constant 0 : index
    %c0_35 = arith.constant 0 : index
    %35 = vector.load %arg8[%c0_34, %c0_35] : memref<2x2xf32, #tpu.memory_space<vmem>>, vector<2x2xf32>
    tpu.vector_store %arg8[%c0_34, %c0_35], %34 {strides = array<i32>} : memref<2x2xf32, #tpu.memory_space<vmem>>, vector<2x2xf32>,
    return
  }
  func.func @transform_0(%arg0: i32) -> (i32, i32, i32) {
    %c0_i32 = arith.constant 0 : i32
    %c0_i32_0 = arith.constant 0 : i32
    %c0_i32_1 = arith.constant 0 : i32
    %c0_i32_2 = arith.constant 0 : i32
    return %c0_i32, %c0_i32_0, %c0_i32_1 : i32, i32, i32
  }
  func.func @transform_1(%arg0: i32) -> (i32, i32) {
    %c0_i32 = arith.constant 0 : i32
    %c0_i32_0 = arith.constant 0 : i32
    %c0_i32_1 = arith.constant 0 : i32
    return %c0_i32, %c0_i32_0 : i32, i32
  }
  func.func @transform_2(%arg0: i32) -> (i32, i32) {
    %c0_i32 = arith.constant 0 : i32
    %c0_i32_0 = arith.constant 0 : i32
    %c0_i32_1 = arith.constant 0 : i32
    return %c0_i32, %c0_i32_0 : i32, i32
  }
  func.func @transform_3(%arg0: i32) -> (i32, i32, i32) {
    %c0_i32 = arith.constant 0 : i32
    %c0_i32_0 = arith.constant 0 : i32
    %c0_i32_1 = arith.constant 0 : i32
    %c0_i32_2 = arith.constant 0 : i32
    return %c0_i32, %c0_i32_0, %c0_i32_1 : i32, i32, i32
  }
  func.func @transform_4(%arg0: i32) -> (i32, i32) {
    %c0_i32 = arith.constant 0 : i32
    %c0_i32_0 = arith.constant 0 : i32
    %c0_i32_1 = arith.constant 0 : i32
    return %c0_i32, %c0_i32_0 : i32, i32
  }
  func.func @transform_5(%arg0: i32) -> (i32, i32) {
    %c0_i32 = arith.constant 0 : i32
    %c0_i32_0 = arith.constant 0 : i32
    %c0_i32_1 = arith.constant 0 : i32
    return %c0_i32, %c0_i32_0 : i32, i32
  }
  func.func @transform_6(%arg0: i32) -> (i32, i32) {
    %c0_i32 = arith.constant 0 : i32
    %c0_i32_0 = arith.constant 0 : i32
    %c0_i32_1 = arith.constant 0 : i32
    return %c0_i32, %c0_i32_0 : i32, i32
  }
  func.func @transform_7(%arg0: i32) -> (i32, i32) {
    %c0_i32 = arith.constant 0 : i32
    %c0_i32_0 = arith.constant 0 : i32
    %c0_i32_1 = arith.constant 0 : i32
    return %c0_i32, %c0_i32_0 : i32, i32
  }
}

</mosaic_0001>

<llo_original>
// kernel: net_forward.1
$region0: #{net_forward.1}
  #allocation0 [shape = 'u32[]', space=smem, size = 0x4, offset = 0x4, fixed_abs, tag = 'smem constant byte address 0x4 - core index']
  #allocation1 [shape = 'u32[144,128]{1,0:T(1,128)}', space=vmem, size = 0x12000, scoped, tag = 'internal scratch']
  #allocation2 [shape = 'f32[4,2,64]{2,1,0:T(2,128)}', space=vmem, size = 0x1000, scoped, tag = 'scratch operand']
  %s0 = inlined_call_operand.vmem [shape: f32[2,49,64], index: 0, kind: input, shape index: {}]
  %s1 = inlined_call_operand.vmem [shape: f32[4,49], index: 1, kind: input, shape index: {}]
  %s2 = inlined_call_operand.vmem [shape: f32[4,1], index: 2, kind: input, shape index: {}]
  %s3 = inlined_call_operand.vmem [shape: f32[4,64,64], index: 3, kind: input, shape index: {}]
  %s4 = inlined_call_operand.vmem [shape: f32[1,64], index: 4, kind: input, shape index: {}]
  %s5 = inlined_call_operand.vmem [shape: f32[64,2], index: 5, kind: input, shape index: {}]
  %s6 = inlined_call_operand.vmem [shape: f32[1,2], index: 6, kind: input, shape index: {}]
  %s7 = inlined_call_operand.hbm [shape: f32[2,2], index: 7, kind: output, shape index: {}]
  %s8 = sld [smem:[#allocation0]]
  $region38: #{net_forward.1} parent=0
    _
  %s10 = ssub.s32 1, %s8
  %s11 = scalar_select 0, %s10, %s8
  $region1: #{net_forward.1} parent=0
    #allocation3 [shape = 'u8[1024]{0}', space=vmem, size = 0x400, scoped, tag = 'output window, operand 0, single buffered']
    #allocation4 [shape = 's32[1]{0}', space=sflag, size = 0x4, scoped, tag = 'scoped memory for net_forward.1']
    %12 = vsyncpa [#allocation4], 0
    // Predicated region
    $region2: #{net_forward.1} parent=1 // pred_check
      _
    $region3: #{net_forward.1} parent=1 // pred_check_branch
      %14 = sbr.rel (0) target = $region5
    $region4: #{net_forward.1} parent=1 // pred_region
      _
    $region5: #{net_forward.1} parent=1 // pred_fallthru
      _
    // Predicated region
    $region6: #{net_forward.1} parent=1 // pred_check
      _
    $region7: #{net_forward.1} parent=1 // pred_check_branch
      %16 = sbr.rel (0) target = $region9
    $region8: #{net_forward.1} parent=1 // pred_region
      _
    $region9: #{net_forward.1} parent=1 // pred_fallthru
      _
    // Predicated region
    $region10: #{net_forward.1} parent=1 // pred_check
      _
    $region11: #{net_forward.1} parent=1 // pred_check_branch
      %18 = sbr.rel (0) target = $region13
    $region12: #{net_forward.1} parent=1 // pred_region
      _
    $region13: #{net_forward.1} parent=1 // pred_fallthru
      _
    // Predicated region
    $region14: #{net_forward.1} parent=1 // pred_check
      _
    $region15: #{net_forward.1} parent=1 // pred_check_branch
      %20 = sbr.rel (0) target = $region17
    $region16: #{net_forward.1} parent=1 // pred_region
      _
    $region17: #{net_forward.1} parent=1 // pred_fallthru
      _
    // Predicated region
    $region18: #{net_forward.1} parent=1 // pred_check
      _
    $region19: #{net_forward.1} parent=1 // pred_check_branch
      %22 = sbr.rel (0) target = $region21
    $region20: #{net_forward.1} parent=1 // pred_region
      _
    $region21: #{net_forward.1} parent=1 // pred_fallthru
      _
    // Predicated region
    $region22: #{net_forward.1} parent=1 // pred_check
      _
    $region23: #{net_forward.1} parent=1 // pred_check_branch
      %24 = sbr.rel (0) target = $region25
    $region24: #{net_forward.1} parent=1 // pred_region
      _
    $region25: #{net_forward.1} parent=1 // pred_fallthru
      _
    // Predicated region
    $region26: #{net_forward.1} parent=1 // pred_check
      _
    $region27: #{net_forward.1} parent=1 // pred_check_branch
      %26 = sbr.rel (0) target = $region29
    $region28: #{net_forward.1} parent=1 // pred_region
      _
    $region29: #{net_forward.1} parent=1 // pred_fallthru
      _
    %v27 = vld [vmem:[%s1] sm:$0xf]
    %v28 = vld [vmem:[%s0] sm:$0xff]
    %v29 = vld [vmem:[%s0 + $0x8] sm:$0xff]
    %v30 = vld [vmem:[%s0 + $0x10] sm:$0xff]
    %v31 = vld [vmem:[%s0 + $0x18] sm:$0xff]
    %v32 = vld [vmem:[%s0 + $0x20] sm:$0xff]
    %v33 = vld [vmem:[%s0 + $0x28] sm:$0xff]
    %v34 = vld [vmem:[%s0 + $0x30] sm:$0x1]
    %v35 = vld [vmem:[%s2] sm:$0xf]
    %37 = vset.pattern.permute.xlu0 0
    %38 = vperm.xlu0 %37, %v35
    %v39 = vpop.permute.xlu0 %38
    %vm41 = vcmask 400384
    %v43 = vsel %vm41, %v27, 0
    %vm45 = vcmask 1040384
    %v47 = vsel %vm45, %v34, 0
    %49 = vmatprep.subr.mxu0 0.0
    %50 = vmatpush1.msra.mxu0 %v28
    %51 = vmatprep.subr.mxu0 0.0
    %52 = vmatpush1.msra.mxu0 %v29
    %53 = vmatprep.subr.mxu0 0.0
    %54 = vmatpush1.msra.mxu0 %v30
    %55 = vmatprep.subr.mxu0 0.0
    %56 = vmatpush1.msra.mxu0 %v31
    %57 = vmatprep.subr.mxu0 0.0
    %58 = vmatpush1.msra.mxu0 %v32
    %59 = vmatprep.subr.mxu0 0.0
    %60 = vmatpush1.msra.mxu0 %v33
    %61 = vmatprep.subr.mxu0 0.0
    %62 = vmatpush1.msra.mxu0 %v47
    %63 = vmatprep.subr.mxu0 0.0
    %64 = vmatpush1.msra.mxu0 0.0
    %65 = vmatprep.subr.mxu0 0.0
    %66 = vmatpush1.msra.mxu0 0.0
    %67 = vmatprep.subr.mxu0 0.0
    %68 = vmatpush1.msra.mxu0 0.0
    %69 = vmatprep.subr.mxu0 0.0
    %70 = vmatpush1.msra.mxu0 0.0
    %71 = vmatprep.subr.mxu0 0.0
    %72 = vmatpush1.msra.mxu0 0.0
    %73 = vmatprep.subr.mxu0 0.0
    %74 = vmatpush1.msra.mxu0 0.0
    %75 = vmatprep.subr.mxu0 0.0
    %76 = vmatpush1.msra.mxu0 0.0
    %77 = vmatprep.subr.mxu0 0.0
    %78 = vmatpush1.msra.mxu0 0.0
    %79 = vmatprep.subr.mxu0 0.0
    %80 = vmatpush1.msra.mxu0 0.0
    %81 = vmatprep.subr.mxu0 0.0
    %82 = vmatpush1.msra.mxu0 0.0
    %83 = vmatprep.subr.mxu0 0.0
    %84 = vmatpush1.msra.mxu0 0.0
    %85 = vmatprep.subr.mxu0 0.0
    %86 = vmatpush1.msra.mxu0 0.0
    %87 = vmatprep.subr.mxu0 0.0
    %88 = vmatpush1.msra.mxu0 0.0
    %89 = vmatprep.subr.mxu0 0.0
    %90 = vmatpush1.msra.mxu0 0.0
    %91 = vmatprep.subr.mxu0 0.0
    %92 = vmatpush1.msra.mxu0 0.0
    %93 = vmatprep.subr.mxu0 0.0
    %94 = vmatpush1.msra.mxu0 0.0
    %95 = vmatprep.subr.mxu0 0.0
    %96 = vmatpush1.msra.mxu0 0.0
    %97 = vmatprep.subr.mxu0 0.0
    %98 = vmatpush1.msra.mxu0 0.0
    %99 = vmatprep.subr.mxu0 0.0
    %100 = vmatpush1.msra.mxu0 0.0
    %101 = vmatprep.subr.mxu0 0.0
    %102 = vmatpush1.msra.mxu0 0.0
    %103 = vmatprep.subr.mxu0 0.0
    %104 = vmatpush1.msra.mxu0 0.0
    %105 = vmatprep.subr.mxu0 0.0
    %106 = vmatpush1.msra.mxu0 0.0
    %107 = vmatprep.subr.mxu0 0.0
    %108 = vmatpush1.msra.mxu0 0.0
    %109 = vmatprep.subr.mxu0 0.0
    %110 = vmatpush1.msra.mxu0 0.0
    %111 = vmatprep.subr.mxu0 0.0
    %112 = vmatpush1.msra.mxu0 0.0
    %113 = vmatprep.mubr.f32.mxu0 0.0
    %114 = vmatmul.mubr.f32.gmra.mrb[0].mxu0 %v43
    %v115 = vpop.f32.mrb[0].mxu0
    %v116 = vadd.f32 %v39, %v115
    %v117 = vpop.f32.mrb[0].mxu0
    %118 = vdwg.mxu0
    %v119 = vmul.f32 %v116, %v116
    %v122 = vunpack.c.l.s4 1966171168
    %v123 = vunpack.c.0.s8 %v122
    %v124 = vlaneseq
    %v125 = vshrl.u32 %v124, 7
    %v126 = vsub.s32 %v123, %v125
    %v127 = vrot.slane %v119, %v126
    %v128 = vcombine.high %v127, %v127
    %v130 = vunpack.c.l.s4 1966171168
    %v131 = vunpack.c.0.s8 %v130
    %v132 = vlaneseq
    %v133 = vshrl.u32 %v132, 7
    %v134 = vsub.s32 %v131, %v133
    %v135 = vrot.slane %v127, %v134
    %v137 = vunpack.c.l.s4 1966171168
    %v138 = vunpack.c.0.s8 %v137
    %v139 = vlaneseq
    %v140 = vshrl.u32 %v139, 7
    %v141 = vsub.s32 %v138, %v140
    %v142 = vrot.slane %v128, %v141
    %v143 = vcombine.high %v135, %v135
    %v144 = vcombine.high %v142, %v142
    %vm149 = vcmask 516096
    %150 = vst.msk [vmem:[#allocation2] sm:$0x1] %vm149, %v135
    %151 = vst.msk [vmem:[#allocation2 + $0x2] sm:$0x1] %vm149, %v142
    %152 = vst.msk [vmem:[#allocation2 + $0x4] sm:$0x1] %vm149, %v143
    %153 = vst.msk [vmem:[#allocation2 + $0x6] sm:$0x1] %vm149, %v144
    %v154 = vld [vmem:[%s1] sm:$0xf]
    %s155 = scalar_lea.vmem %s0, 56
    %v156 = vld [vmem:[%s155] sm:$0xff]
    %v157 = vld [vmem:[%s155 + $0x8] sm:$0xff]
    %v158 = vld [vmem:[%s155 + $0x10] sm:$0xff]
    %v159 = vld [vmem:[%s155 + $0x18] sm:$0xff]
    %v160 = vld [vmem:[%s155 + $0x20] sm:$0xff]
    %v161 = vld [vmem:[%s155 + $0x28] sm:$0xff]
    %v162 = vld [vmem:[%s155 + $0x30] sm:$0x1]
    %v163 = vld [vmem:[%s2] sm:$0xf]
    %165 = vset.pattern.permute.xlu0 0
    %166 = vperm.xlu0 %165, %v163
    %v167 = vpop.permute.xlu0 %166
    %v170 = vsel %vm41, %v154, 0
    %v173 = vsel %vm45, %v162, 0
    %175 = vmatprep.subr.mxu0 0.0
    %176 = vmatpush1.msra.mxu0 %v156
    %177 = vmatprep.subr.mxu0 0.0
    %178 = vmatpush1.msra.mxu0 %v157
    %179 = vmatprep.subr.mxu0 0.0
    %180 = vmatpush1.msra.mxu0 %v158
    %181 = vmatprep.subr.mxu0 0.0
    %182 = vmatpush1.msra.mxu0 %v159
    %183 = vmatprep.subr.mxu0 0.0
    %184 = vmatpush1.msra.mxu0 %v160
    %185 = vmatprep.subr.mxu0 0.0
    %186 = vmatpush1.msra.mxu0 %v161
    %187 = vmatprep.subr.mxu0 0.0
    %188 = vmatpush1.msra.mxu0 %v173
    %189 = vmatprep.subr.mxu0 0.0
    %190 = vmatpush1.msra.mxu0 0.0
    %191 = vmatprep.subr.mxu0 0.0
    %192 = vmatpush1.msra.mxu0 0.0
    %193 = vmatprep.subr.mxu0 0.0
    %194 = vmatpush1.msra.mxu0 0.0
    %195 = vmatprep.subr.mxu0 0.0
    %196 = vmatpush1.msra.mxu0 0.0
    %197 = vmatprep.subr.mxu0 0.0
    %198 = vmatpush1.msra.mxu0 0.0
    %199 = vmatprep.subr.mxu0 0.0
    %200 = vmatpush1.msra.mxu0 0.0
    %201 = vmatprep.subr.mxu0 0.0
    %202 = vmatpush1.msra.mxu0 0.0
    %203 = vmatprep.subr.mxu0 0.0
    %204 = vmatpush1.msra.mxu0 0.0
    %205 = vmatprep.subr.mxu0 0.0
    %206 = vmatpush1.msra.mxu0 0.0
    %207 = vmatprep.subr.mxu0 0.0
    %208 = vmatpush1.msra.mxu0 0.0
    %209 = vmatprep.subr.mxu0 0.0
    %210 = vmatpush1.msra.mxu0 0.0
    %211 = vmatprep.subr.mxu0 0.0
    %212 = vmatpush1.msra.mxu0 0.0
    %213 = vmatprep.subr.mxu0 0.0
    %214 = vmatpush1.msra.mxu0 0.0
    %215 = vmatprep.subr.mxu0 0.0
    %216 = vmatpush1.msra.mxu0 0.0
    %217 = vmatprep.subr.mxu0 0.0
    %218 = vmatpush1.msra.mxu0 0.0
    %219 = vmatprep.subr.mxu0 0.0
    %220 = vmatpush1.msra.mxu0 0.0
    %221 = vmatprep.subr.mxu0 0.0
    %222 = vmatpush1.msra.mxu0 0.0
    %223 = vmatprep.subr.mxu0 0.0
    %224 = vmatpush1.msra.mxu0 0.0
    %225 = vmatprep.subr.mxu0 0.0
    %226 = vmatpush1.msra.mxu0 0.0
    %227 = vmatprep.subr.mxu0 0.0
    %228 = vmatpush1.msra.mxu0 0.0
    %229 = vmatprep.subr.mxu0 0.0
    %230 = vmatpush1.msra.mxu0 0.0
    %231 = vmatprep.subr.mxu0 0.0
    %232 = vmatpush1.msra.mxu0 0.0
    %233 = vmatprep.subr.mxu0 0.0
    %234 = vmatpush1.msra.mxu0 0.0
    %235 = vmatprep.subr.mxu0 0.0
    %236 = vmatpush1.msra.mxu0 0.0
    %237 = vmatprep.subr.mxu0 0.0
    %238 = vmatpush1.msra.mxu0 0.0
    %239 = vmatprep.mubr.f32.mxu0 0.0
    %240 = vmatmul.mubr.f32.gmra.mrb[0].mxu0 %v170
    %v241 = vpop.f32.mrb[0].mxu0
    %v242 = vadd.f32 %v167, %v241
    %v243 = vpop.f32.mrb[0].mxu0
    %244 = vdwg.mxu0
    %v245 = vmul.f32 %v242, %v242
    %v248 = vunpack.c.l.s4 1966171168
    %v249 = vunpack.c.0.s8 %v248
    %v250 = vlaneseq
    %v251 = vshrl.u32 %v250, 7
    %v252 = vsub.s32 %v249, %v251
    %v253 = vrot.slane %v245, %v252
    %v254 = vcombine.high %v253, %v253
    %v256 = vunpack.c.l.s4 1966171168
    %v257 = vunpack.c.0.s8 %v256
    %v258 = vlaneseq
    %v259 = vshrl.u32 %v258, 7
    %v260 = vsub.s32 %v257, %v259
    %v261 = vrot.slane %v253, %v260
    %v263 = vunpack.c.l.s4 1966171168
    %v264 = vunpack.c.0.s8 %v263
    %v265 = vlaneseq
    %v266 = vshrl.u32 %v265, 7
    %v267 = vsub.s32 %v264, %v266
    %v268 = vrot.slane %v254, %v267
    %v269 = vcombine.high %v261, %v261
    %v270 = vcombine.high %v268, %v268
    %275 = vst.msk [vmem:[#allocation2 + $0x1] sm:$0x1] %vm149, %v261
    %276 = vst.msk [vmem:[#allocation2 + $0x3] sm:$0x1] %vm149, %v268
    %277 = vst.msk [vmem:[#allocation2 + $0x5] sm:$0x1] %vm149, %v269
    %278 = vst.msk [vmem:[#allocation2 + $0x7] sm:$0x1] %vm149, %v270
    %v279 = vld [vmem:[#allocation2] sm:$0x3]
    %v280 = vld [vmem:[#allocation2 + $0x2] sm:$0x3]
    %v281 = vld [vmem:[#allocation2 + $0x4] sm:$0x3]
    %v282 = vld [vmem:[#allocation2 + $0x6] sm:$0x3]
    %v283 = vld [vmem:[%s3] sm:$0xff]
    %v284 = vld [vmem:[%s3 + $0x8] sm:$0xff]
    %v285 = vld [vmem:[%s3 + $0x10] sm:$0xff]
    %v286 = vld [vmem:[%s3 + $0x18] sm:$0xff]
    %v287 = vld [vmem:[%s3 + $0x20] sm:$0xff]
    %v288 = vld [vmem:[%s3 + $0x28] sm:$0xff]
    %v289 = vld [vmem:[%s3 + $0x30] sm:$0xff]
    %v290 = vld [vmem:[%s3 + $0x38] sm:$0xff]
    %v291 = vld [vmem:[%s3 + $0x40] sm:$0xff]
    %v292 = vld [vmem:[%s3 + $0x48] sm:$0xff]
    %v293 = vld [vmem:[%s3 + $0x50] sm:$0xff]
    %v294 = vld [vmem:[%s3 + $0x58] sm:$0xff]
    %v295 = vld [vmem:[%s3 + $0x60] sm:$0xff]
    %v296 = vld [vmem:[%s3 + $0x68] sm:$0xff]
    %v297 = vld [vmem:[%s3 + $0x70] sm:$0xff]
    %v298 = vld [vmem:[%s3 + $0x78] sm:$0xff]
    %v299 = vld [vmem:[%s3 + $0x80] sm:$0xff]
    %v300 = vld [vmem:[%s3 + $0x88] sm:$0xff]
    %v301 = vld [vmem:[%s3 + $0x90] sm:$0xff]
    %v302 = vld [vmem:[%s3 + $0x98] sm:$0xff]
    %v303 = vld [vmem:[%s3 + $0xa0] sm:$0xff]
    %v304 = vld [vmem:[%s3 + $0xa8] sm:$0xff]
    %v305 = vld [vmem:[%s3 + $0xb0] sm:$0xff]
    %v306 = vld [vmem:[%s3 + $0xb8] sm:$0xff]
    %v307 = vld [vmem:[%s3 + $0xc0] sm:$0xff]
    %v308 = vld [vmem:[%s3 + $0xc8] sm:$0xff]
    %v309 = vld [vmem:[%s3 + $0xd0] sm:$0xff]
    %v310 = vld [vmem:[%s3 + $0xd8] sm:$0xff]
    %v311 = vld [vmem:[%s3 + $0xe0] sm:$0xff]
    %v312 = vld [vmem:[%s3 + $0xe8] sm:$0xff]
    %v313 = vld [vmem:[%s3 + $0xf0] sm:$0xff]
    %v314 = vld [vmem:[%s3 + $0xf8] sm:$0xff]
    %vm315 = vcmask 523264
    %v317 = vsel %vm315, %v279, 0
    %319 = vmatprep.subr.mxu0 0.0
    %320 = vmatpush1.msra.mxu0 %v283
    %321 = vmatprep.subr.mxu0 0.0
    %322 = vmatpush1.msra.mxu0 %v284
    %323 = vmatprep.subr.mxu0 0.0
    %324 = vmatpush1.msra.mxu0 %v285
    %325 = vmatprep.subr.mxu0 0.0
    %326 = vmatpush1.msra.mxu0 %v286
    %327 = vmatprep.subr.mxu0 0.0
    %328 = vmatpush1.msra.mxu0 %v287
    %329 = vmatprep.subr.mxu0 0.0
    %330 = vmatpush1.msra.mxu0 %v288
    %331 = vmatprep.subr.mxu0 0.0
    %332 = vmatpush1.msra.mxu0 %v289
    %333 = vmatprep.subr.mxu0 0.0
    %334 = vmatpush1.msra.mxu0 %v290
    %335 = vmatprep.subr.mxu0 0.0
    %336 = vmatpush1.msra.mxu0 0.0
    %337 = vmatprep.subr.mxu0 0.0
    %338 = vmatpush1.msra.mxu0 0.0
    %339 = vmatprep.subr.mxu0 0.0
    %340 = vmatpush1.msra.mxu0 0.0
    %341 = vmatprep.subr.mxu0 0.0
    %342 = vmatpush1.msra.mxu0 0.0
    %343 = vmatprep.subr.mxu0 0.0
    %344 = vmatpush1.msra.mxu0 0.0
    %345 = vmatprep.subr.mxu0 0.0
    %346 = vmatpush1.msra.mxu0 0.0
    %347 = vmatprep.subr.mxu0 0.0
    %348 = vmatpush1.msra.mxu0 0.0
    %349 = vmatprep.subr.mxu0 0.0
    %350 = vmatpush1.msra.mxu0 0.0
    %351 = vmatprep.subr.mxu0 0.0
    %352 = vmatpush1.msra.mxu0 0.0
    %353 = vmatprep.subr.mxu0 0.0
    %354 = vmatpush1.msra.mxu0 0.0
    %355 = vmatprep.subr.mxu0 0.0
    %356 = vmatpush1.msra.mxu0 0.0
    %357 = vmatprep.subr.mxu0 0.0
    %358 = vmatpush1.msra.mxu0 0.0
    %359 = vmatprep.subr.mxu0 0.0
    %360 = vmatpush1.msra.mxu0 0.0
    %361 = vmatprep.subr.mxu0 0.0
    %362 = vmatpush1.msra.mxu0 0.0
    %363 = vmatprep.subr.mxu0 0.0
    %364 = vmatpush1.msra.mxu0 0.0
    %365 = vmatprep.subr.mxu0 0.0
    %366 = vmatpush1.msra.mxu0 0.0
    %367 = vmatprep.subr.mxu0 0.0
    %368 = vmatpush1.msra.mxu0 0.0
    %369 = vmatprep.subr.mxu0 0.0
    %370 = vmatpush1.msra.mxu0 0.0
    %371 = vmatprep.subr.mxu0 0.0
    %372 = vmatpush1.msra.mxu0 0.0
    %373 = vmatprep.subr.mxu0 0.0
    %374 = vmatpush1.msra.mxu0 0.0
    %375 = vmatprep.subr.mxu0 0.0
    %376 = vmatpush1.msra.mxu0 0.0
    %377 = vmatprep.subr.mxu0 0.0
    %378 = vmatpush1.msra.mxu0 0.0
    %379 = vmatprep.subr.mxu0 0.0
    %380 = vmatpush1.msra.mxu0 0.0
    %381 = vmatprep.subr.mxu0 0.0
    %382 = vmatpush1.msra.mxu0 0.0
    %383 = vmatprep.mubr.f32.mxu0 0.0
    %384 = vmatmul.mubr.f32.gmra.mrb[0].mxu0 %v317
    %v385 = vpop.f32.mrb[0].mxu0
    %v386 = vadd.f32 0.0, %v385
    %v387 = vpop.f32.mrb[0].mxu0
    %388 = vdwg.mxu0
    %v390 = vsel %vm315, %v280, 0
    %392 = vmatprep.subr.mxu0 0.0
    %393 = vmatpush1.msra.mxu0 %v291
    %394 = vmatprep.subr.mxu0 0.0
    %395 = vmatpush1.msra.mxu0 %v292
    %396 = vmatprep.subr.mxu0 0.0
    %397 = vmatpush1.msra.mxu0 %v293
    %398 = vmatprep.subr.mxu0 0.0
    %399 = vmatpush1.msra.mxu0 %v294
    %400 = vmatprep.subr.mxu0 0.0
    %401 = vmatpush1.msra.mxu0 %v295
    %402 = vmatprep.subr.mxu0 0.0
    %403 = vmatpush1.msra.mxu0 %v296
    %404 = vmatprep.subr.mxu0 0.0
    %405 = vmatpush1.msra.mxu0 %v297
    %406 = vmatprep.subr.mxu0 0.0
    %407 = vmatpush1.msra.mxu0 %v298
    %408 = vmatprep.subr.mxu0 0.0
    %409 = vmatpush1.msra.mxu0 0.0
    %410 = vmatprep.subr.mxu0 0.0
    %411 = vmatpush1.msra.mxu0 0.0
    %412 = vmatprep.subr.mxu0 0.0
    %413 = vmatpush1.msra.mxu0 0.0
    %414 = vmatprep.subr.mxu0 0.0
    %415 = vmatpush1.msra.mxu0 0.0
    %416 = vmatprep.subr.mxu0 0.0
    %417 = vmatpush1.msra.mxu0 0.0
    %418 = vmatprep.subr.mxu0 0.0
    %419 = vmatpush1.msra.mxu0 0.0
    %420 = vmatprep.subr.mxu0 0.0
    %421 = vmatpush1.msra.mxu0 0.0
    %422 = vmatprep.subr.mxu0 0.0
    %423 = vmatpush1.msra.mxu0 0.0
    %424 = vmatprep.subr.mxu0 0.0
    %425 = vmatpush1.msra.mxu0 0.0
    %426 = vmatprep.subr.mxu0 0.0
    %427 = vmatpush1.msra.mxu0 0.0
    %428 = vmatprep.subr.mxu0 0.0
    %429 = vmatpush1.msra.mxu0 0.0
    %430 = vmatprep.subr.mxu0 0.0
    %431 = vmatpush1.msra.mxu0 0.0
    %432 = vmatprep.subr.mxu0 0.0
    %433 = vmatpush1.msra.mxu0 0.0
    %434 = vmatprep.subr.mxu0 0.0
    %435 = vmatpush1.msra.mxu0 0.0
    %436 = vmatprep.subr.mxu0 0.0
    %437 = vmatpush1.msra.mxu0 0.0
    %438 = vmatprep.subr.mxu0 0.0
    %439 = vmatpush1.msra.mxu0 0.0
    %440 = vmatprep.subr.mxu0 0.0
    %441 = vmatpush1.msra.mxu0 0.0
    %442 = vmatprep.subr.mxu0 0.0
    %443 = vmatpush1.msra.mxu0 0.0
    %444 = vmatprep.subr.mxu0 0.0
    %445 = vmatpush1.msra.mxu0 0.0
    %446 = vmatprep.subr.mxu0 0.0
    %447 = vmatpush1.msra.mxu0 0.0
    %448 = vmatprep.subr.mxu0 0.0
    %449 = vmatpush1.msra.mxu0 0.0
    %450 = vmatprep.subr.mxu0 0.0
    %451 = vmatpush1.msra.mxu0 0.0
    %452 = vmatprep.subr.mxu0 0.0
    %453 = vmatpush1.msra.mxu0 0.0
    %454 = vmatprep.subr.mxu0 0.0
    %455 = vmatpush1.msra.mxu0 0.0
    %456 = vmatprep.mubr.f32.mxu0 0.0
    %457 = vmatmul.mubr.f32.gmra.mrb[0].mxu0 %v390
    %v458 = vpop.f32.mrb[0].mxu0
    %v459 = vadd.f32 0.0, %v458
    %v460 = vpop.f32.mrb[0].mxu0
    %461 = vdwg.mxu0
    %v463 = vsel %vm315, %v281, 0
    %465 = vmatprep.subr.mxu0 0.0
    %466 = vmatpush1.msra.mxu0 %v299
    %467 = vmatprep.subr.mxu0 0.0
    %468 = vmatpush1.msra.mxu0 %v300
    %469 = vmatprep.subr.mxu0 0.0
    %470 = vmatpush1.msra.mxu0 %v301
    %471 = vmatprep.subr.mxu0 0.0
    %472 = vmatpush1.msra.mxu0 %v302
    %473 = vmatprep.subr.mxu0 0.0
    %474 = vmatpush1.msra.mxu0 %v303
    %475 = vmatprep.subr.mxu0 0.0
    %476 = vmatpush1.msra.mxu0 %v304
    %477 = vmatprep.subr.mxu0 0.0
    %478 = vmatpush1.msra.mxu0 %v305
    %479 = vmatprep.subr.mxu0 0.0
    %480 = vmatpush1.msra.mxu0 %v306
    %481 = vmatprep.subr.mxu0 0.0
    %482 = vmatpush1.msra.mxu0 0.0
    %483 = vmatprep.subr.mxu0 0.0
    %484 = vmatpush1.msra.mxu0 0.0
    %485 = vmatprep.subr.mxu0 0.0
    %486 = vmatpush1.msra.mxu0 0.0
    %487 = vmatprep.subr.mxu0 0.0
    %488 = vmatpush1.msra.mxu0 0.0
    %489 = vmatprep.subr.mxu0 0.0
    %490 = vmatpush1.msra.mxu0 0.0
    %491 = vmatprep.subr.mxu0 0.0
    %492 = vmatpush1.msra.mxu0 0.0
    %493 = vmatprep.subr.mxu0 0.0
    %494 = vmatpush1.msra.mxu0 0.0
    %495 = vmatprep.subr.mxu0 0.0
    %496 = vmatpush1.msra.mxu0 0.0
    %497 = vmatprep.subr.mxu0 0.0
    %498 = vmatpush1.msra.mxu0 0.0
    %499 = vmatprep.subr.mxu0 0.0
    %500 = vmatpush1.msra.mxu0 0.0
    %501 = vmatprep.subr.mxu0 0.0
    %502 = vmatpush1.msra.mxu0 0.0
    %503 = vmatprep.subr.mxu0 0.0
    %504 = vmatpush1.msra.mxu0 0.0
    %505 = vmatprep.subr.mxu0 0.0
    %506 = vmatpush1.msra.mxu0 0.0
    %507 = vmatprep.subr.mxu0 0.0
    %508 = vmatpush1.msra.mxu0 0.0
    %509 = vmatprep.subr.mxu0 0.0
    %510 = vmatpush1.msra.mxu0 0.0
    %511 = vmatprep.subr.mxu0 0.0
    %512 = vmatpush1.msra.mxu0 0.0
    %513 = vmatprep.subr.mxu0 0.0
    %514 = vmatpush1.msra.mxu0 0.0
    %515 = vmatprep.subr.mxu0 0.0
    %516 = vmatpush1.msra.mxu0 0.0
    %517 = vmatprep.subr.mxu0 0.0
    %518 = vmatpush1.msra.mxu0 0.0
    %519 = vmatprep.subr.mxu0 0.0
    %520 = vmatpush1.msra.mxu0 0.0
    %521 = vmatprep.subr.mxu0 0.0
    %522 = vmatpush1.msra.mxu0 0.0
    %523 = vmatprep.subr.mxu0 0.0
    %524 = vmatpush1.msra.mxu0 0.0
    %525 = vmatprep.subr.mxu0 0.0
    %526 = vmatpush1.msra.mxu0 0.0
    %527 = vmatprep.subr.mxu0 0.0
    %528 = vmatpush1.msra.mxu0 0.0
    %529 = vmatprep.mubr.f32.mxu0 0.0
    %530 = vmatmul.mubr.f32.gmra.mrb[0].mxu0 %v463
    %v531 = vpop.f32.mrb[0].mxu0
    %v532 = vadd.f32 0.0, %v531
    %v533 = vpop.f32.mrb[0].mxu0
    %534 = vdwg.mxu0
    %v536 = vsel %vm315, %v282, 0
    %538 = vmatprep.subr.mxu0 0.0
    %539 = vmatpush1.msra.mxu0 %v307
    %540 = vmatprep.subr.mxu0 0.0
    %541 = vmatpush1.msra.mxu0 %v308
    %542 = vmatprep.subr.mxu0 0.0
    %543 = vmatpush1.msra.mxu0 %v309
    %544 = vmatprep.subr.mxu0 0.0
    %545 = vmatpush1.msra.mxu0 %v310
    %546 = vmatprep.subr.mxu0 0.0
    %547 = vmatpush1.msra.mxu0 %v311
    %548 = vmatprep.subr.mxu0 0.0
    %549 = vmatpush1.msra.mxu0 %v312
    %550 = vmatprep.subr.mxu0 0.0
    %551 = vmatpush1.msra.mxu0 %v313
    %552 = vmatprep.subr.mxu0 0.0
    %553 = vmatpush1.msra.mxu0 %v314
    %554 = vmatprep.subr.mxu0 0.0
    %555 = vmatpush1.msra.mxu0 0.0
    %556 = vmatprep.subr.mxu0 0.0
    %557 = vmatpush1.msra.mxu0 0.0
    %558 = vmatprep.subr.mxu0 0.0
    %559 = vmatpush1.msra.mxu0 0.0
    %560 = vmatprep.subr.mxu0 0.0
    %561 = vmatpush1.msra.mxu0 0.0
    %562 = vmatprep.subr.mxu0 0.0
    %563 = vmatpush1.msra.mxu0 0.0
    %564 = vmatprep.subr.mxu0 0.0
    %565 = vmatpush1.msra.mxu0 0.0
    %566 = vmatprep.subr.mxu0 0.0
    %567 = vmatpush1.msra.mxu0 0.0
    %568 = vmatprep.subr.mxu0 0.0
    %569 = vmatpush1.msra.mxu0 0.0
    %570 = vmatprep.subr.mxu0 0.0
    %571 = vmatpush1.msra.mxu0 0.0
    %572 = vmatprep.subr.mxu0 0.0
    %573 = vmatpush1.msra.mxu0 0.0
    %574 = vmatprep.subr.mxu0 0.0
    %575 = vmatpush1.msra.mxu0 0.0
    %576 = vmatprep.subr.mxu0 0.0
    %577 = vmatpush1.msra.mxu0 0.0
    %578 = vmatprep.subr.mxu0 0.0
    %579 = vmatpush1.msra.mxu0 0.0
    %580 = vmatprep.subr.mxu0 0.0
    %581 = vmatpush1.msra.mxu0 0.0
    %582 = vmatprep.subr.mxu0 0.0
    %583 = vmatpush1.msra.mxu0 0.0
    %584 = vmatprep.subr.mxu0 0.0
    %585 = vmatpush1.msra.mxu0 0.0
    %586 = vmatprep.subr.mxu0 0.0
    %587 = vmatpush1.msra.mxu0 0.0
    %588 = vmatprep.subr.mxu0 0.0
    %589 = vmatpush1.msra.mxu0 0.0
    %590 = vmatprep.subr.mxu0 0.0
    %591 = vmatpush1.msra.mxu0 0.0
    %592 = vmatprep.subr.mxu0 0.0
    %593 = vmatpush1.msra.mxu0 0.0
    %594 = vmatprep.subr.mxu0 0.0
    %595 = vmatpush1.msra.mxu0 0.0
    %596 = vmatprep.subr.mxu0 0.0
    %597 = vmatpush1.msra.mxu0 0.0
    %598 = vmatprep.subr.mxu0 0.0
    %599 = vmatpush1.msra.mxu0 0.0
    %600 = vmatprep.subr.mxu0 0.0
    %601 = vmatpush1.msra.mxu0 0.0
    %602 = vmatprep.mubr.f32.mxu0 0.0
    %603 = vmatmul.mubr.f32.gmra.mrb[0].mxu0 %v536
    %v604 = vpop.f32.mrb[0].mxu0
    %v605 = vadd.f32 0.0, %v604
    %v606 = vpop.f32.mrb[0].mxu0
    %607 = vdwg.mxu0
    %vm608 = vcmask 517120
    %v609 = vsel %vm608, %v386, 0.0
    %v610 = vsel %vm608, %v459, 0.0
    %v611 = vadd.f32 %v609, %v610
    %v612 = vsel %vm608, %v532, 0.0
    %v613 = vadd.f32 %v611, %v612
    %v614 = vsel %vm608, %v605, 0.0
    %v615 = vadd.f32 %v613, %v614
    %v616 = vld [vmem:[%s4] sm:$0x1]
    %v618 = vlaneseq
    %v619 = vshrl.u32 %v618, 7
    %v620 = vsub.s32 0, %v619
    %v621 = vrot.slane %v616, %v620
    %v623 = vadd.f32 %v615, %v621
    %v624 = vmul.f32 %v623, %v623
    %v625 = vld [vmem:[%s5] sm:$0xff]
    %v626 = vld [vmem:[%s5 + $0x8] sm:$0xff]
    %v627 = vld [vmem:[%s5 + $0x10] sm:$0xff]
    %v628 = vld [vmem:[%s5 + $0x18] sm:$0xff]
    %v629 = vld [vmem:[%s5 + $0x20] sm:$0xff]
    %v630 = vld [vmem:[%s5 + $0x28] sm:$0xff]
    %v631 = vld [vmem:[%s5 + $0x30] sm:$0xff]
    %v632 = vld [vmem:[%s5 + $0x38] sm:$0xff]
    %v633 = vld [vmem:[%s6] sm:$0x1]
    %v635 = vlaneseq
    %v636 = vshrl.u32 %v635, 7
    %v637 = vsub.s32 0, %v636
    %v638 = vrot.slane %v633, %v637
    %v641 = vsel %vm315, %v624, 0
    %643 = vmatprep.subr.mxu0 0.0
    %644 = vmatpush1.msra.mxu0 %v625
    %645 = vmatprep.subr.mxu0 0.0
    %646 = vmatpush1.msra.mxu0 %v626
    %647 = vmatprep.subr.mxu0 0.0
    %648 = vmatpush1.msra.mxu0 %v627
    %649 = vmatprep.subr.mxu0 0.0
    %650 = vmatpush1.msra.mxu0 %v628
    %651 = vmatprep.subr.mxu0 0.0
    %652 = vmatpush1.msra.mxu0 %v629
    %653 = vmatprep.subr.mxu0 0.0
    %654 = vmatpush1.msra.mxu0 %v630
    %655 = vmatprep.subr.mxu0 0.0
    %656 = vmatpush1.msra.mxu0 %v631
    %657 = vmatprep.subr.mxu0 0.0
    %658 = vmatpush1.msra.mxu0 %v632
    %659 = vmatprep.subr.mxu0 0.0
    %660 = vmatpush1.msra.mxu0 0.0
    %661 = vmatprep.subr.mxu0 0.0
    %662 = vmatpush1.msra.mxu0 0.0
    %663 = vmatprep.subr.mxu0 0.0
    %664 = vmatpush1.msra.mxu0 0.0
    %665 = vmatprep.subr.mxu0 0.0
    %666 = vmatpush1.msra.mxu0 0.0
    %667 = vmatprep.subr.mxu0 0.0
    %668 = vmatpush1.msra.mxu0 0.0
    %669 = vmatprep.subr.mxu0 0.0
    %670 = vmatpush1.msra.mxu0 0.0
    %671 = vmatprep.subr.mxu0 0.0
    %672 = vmatpush1.msra.mxu0 0.0
    %673 = vmatprep.subr.mxu0 0.0
    %674 = vmatpush1.msra.mxu0 0.0
    %675 = vmatprep.subr.mxu0 0.0
    %676 = vmatpush1.msra.mxu0 0.0
    %677 = vmatprep.subr.mxu0 0.0
    %678 = vmatpush1.msra.mxu0 0.0
    %679 = vmatprep.subr.mxu0 0.0
    %680 = vmatpush1.msra.mxu0 0.0
    %681 = vmatprep.subr.mxu0 0.0
    %682 = vmatpush1.msra.mxu0 0.0
    %683 = vmatprep.subr.mxu0 0.0
    %684 = vmatpush1.msra.mxu0 0.0
    %685 = vmatprep.subr.mxu0 0.0
    %686 = vmatpush1.msra.mxu0 0.0
    %687 = vmatprep.subr.mxu0 0.0
    %688 = vmatpush1.msra.mxu0 0.0
    %689 = vmatprep.subr.mxu0 0.0
    %690 = vmatpush1.msra.mxu0 0.0
    %691 = vmatprep.subr.mxu0 0.0
    %692 = vmatpush1.msra.mxu0 0.0
    %693 = vmatprep.subr.mxu0 0.0
    %694 = vmatpush1.msra.mxu0 0.0
    %695 = vmatprep.subr.mxu0 0.0
    %696 = vmatpush1.msra.mxu0 0.0
    %697 = vmatprep.subr.mxu0 0.0
    %698 = vmatpush1.msra.mxu0 0.0
    %699 = vmatprep.subr.mxu0 0.0
    %700 = vmatpush1.msra.mxu0 0.0
    %701 = vmatprep.subr.mxu0 0.0
    %702 = vmatpush1.msra.mxu0 0.0
    %703 = vmatprep.subr.mxu0 0.0
    %704 = vmatpush1.msra.mxu0 0.0
    %705 = vmatprep.subr.mxu0 0.0
    %706 = vmatpush1.msra.mxu0 0.0
    %707 = vmatprep.mubr.f32.mxu0 0.0
    %708 = vmatmul.mubr.f32.gmra.mrb[0].mxu0 %v641
    %v709 = vpop.f32.mrb[0].mxu0
    %v710 = vadd.f32 %v638, %v709
    %v711 = vpop.f32.mrb[0].mxu0
    %712 = vdwg.mxu0
    %vm713 = vcmask 9216
    %714 = vst.msk [vmem:[#allocation3] sm:$0x3] %vm713, %v710
    // Predicated region
    $region30: #{net_forward.1} parent=1 // pred_check
      _
    $region31: #{net_forward.1} parent=1 // pred_check_branch
      %716 = sbr.rel (0) target = $region33
    $region32: #{net_forward.1} parent=1 // pred_region
      %s718 = ssub.s32 32, 32
      %719 = vsyncadd [#allocation4], %s718
      %s721 = sshll.u32 [#allocation3], 4
      %s722 = int_to_ptr.vmem [resolvable:$true] %s721
      %724 = dma.vmem_to_hbm [thread:$0]  %s722, 32, %s7, [#allocation4]
    $region33: #{net_forward.1} parent=1 // pred_fallthru
      _
    // Predicated region
    $region34: #{net_forward.1} parent=1 // pred_check
      _
    $region35: #{net_forward.1} parent=1 // pred_check_branch
      %726 = sbr.rel (0) target = $region37
    $region36: #{net_forward.1} parent=1 // pred_region
      %727 = dma.done [#allocation4], 32
    $region37: #{net_forward.1} parent=1 // pred_fallthru
      _
    %728 = vsyncpa [#allocation4], 1

</llo_original>
